<compile_context>
chip_gen: v7x
topology: tpu7x:2x2x1
jax: 0.10.0
libtpu: 0.0.40
codegen_flags: <defaults>
</compile_context>

<pallas_src>
import functools
import math

import jax
import jax.numpy as jnp
from jax import lax
from jax.experimental import pallas as pl
from jax.experimental.pallas import tpu as pltpu

_INV_SQRT2 = 1.0 / math.sqrt(2.0)


def _gelu_exact(h):
    # Exact (erf-based) GELU in f32, matching torch.nn.GELU() default.
    # (Approximate tanh GELU would move the transcendental to the EUP slot; kept exact to
    #  match the PyTorch module's numerics.)
    return 0.5 * h * (1.0 + lax.erf(h * jnp.float32(_INV_SQRT2)))


# ----------------------------------------------------------------------------- kernels


def _ffn_resident_kernel(x_ref, w1_ref, b1_ref, w2_ref, b2_ref, o_ref, *maybe_acc,
                         n_chunks):
    """Weights fully resident in VMEM; ff reduction chunked inside the kernel.

    Weight refs are shaped (n_chunks, in, ff_chunk) / (n_chunks, 1, ff_chunk) /
    (n_chunks, ff_chunk, in); chunk c is selected by leading-axis indexing.
    """
    acc_ref = maybe_acc[0] if maybe_acc else o_ref   # f32 output -> accumulate in place
    x = x_ref[...]
    # Fold the fc2 bias into the accumulator init (removes an epilogue add).
    acc_ref[...] = jnp.broadcast_to(b2_ref[...].astype(acc_ref.dtype), acc_ref.shape)

    def chunk(c, carry):
        h = jnp.dot(x, w1_ref[c], preferred_element_type=jnp.float32)
        h = h + b1_ref[c].astype(jnp.float32)
        # Dropout is identity in eval/inference mode.
        # TODO(synk): training-mode dropout (pltpu.prng_seed / stateful_bernoulli) not implemented.
        h = _gelu_exact(h)
        acc_ref[...] += jnp.dot(h.astype(w2_ref.dtype), w2_ref[c],
                                preferred_element_type=jnp.float32).astype(acc_ref.dtype)
        return carry

    if n_chunks == 1:
        chunk(0, 0)
    else:
        lax.fori_loop(0, n_chunks, chunk, 0, unroll=(n_chunks <= 8))

    if maybe_acc:
        o_ref[...] = acc_ref[...].astype(o_ref.dtype)


def _ffn_tiled_kernel(x_ref, w1_ref, b1_ref, w2_ref, b2_ref, o_ref, *maybe_acc):
    """ff axis on the grid (reduction axis, last); weight slices streamed per j step."""
    acc_ref = maybe_acc[0] if maybe_acc else o_ref   # f32 output -> accumulate in o_ref
    j = pl.program_id(1)

    @pl.when(j == 0)
    def _init():
        acc_ref[...] = jnp.broadcast_to(b2_ref[...].astype(acc_ref.dtype), acc_ref.shape)

    h = jnp.dot(x_ref[...], w1_ref[...], preferred_element_type=jnp.float32)
    h = h + b1_ref[...].astype(jnp.float32)
    # Dropout is identity in eval/inference mode (see TODO above).
    h = _gelu_exact(h)
    acc_ref[...] += jnp.dot(h.astype(w2_ref.dtype), w2_ref[...],
                            preferred_element_type=jnp.float32).astype(acc_ref.dtype)

    if maybe_acc:
        @pl.when(j == pl.num_programs(1) - 1)
        def _store():
            o_ref[...] = acc_ref[...].astype(o_ref.dtype)


# ------------------------------------------------------------------- capability / sizing


_SINGLE_BUFFER_OK = None


def _single_buffer_supported():
    """One-time explicit capability probe for pl.Buffered(1) (single-buffered blocks)."""
    global _SINGLE_BUFFER_OK
    if _SINGLE_BUFFER_OK is None:
        ok = hasattr(pl, "Buffered")
        if ok:
            def _probe(x_ref, o_ref):
                o_ref[...] = x_ref[...] + 1.0
            try:
                out = pl.pallas_call(
                    _probe,
                    out_shape=jax.ShapeDtypeStruct((8, 128), jnp.float32),
                    grid_spec=pltpu.PrefetchScalarGridSpec(
                        num_scalar_prefetch=0,
                        grid=(1,),
                        in_specs=[pl.BlockSpec((8, 128), lambda i: (0, 0),
                                               pipeline_mode=pl.Buffered(1))],
                        out_specs=pl.BlockSpec((8, 128), lambda i: (0, 0)),
                    ),
                )(jnp.zeros((8, 128), jnp.float32))
                jax.block_until_ready(out)
            except Exception:  # capability probe only; the real kernel is never retried
                ok = False
        _SINGLE_BUFFER_OK = ok
    return _SINGLE_BUFFER_OK


def _round_up(x, m):
    return (x + m - 1) // m * m


def _cdiv(a, b):
    return -(-a // b)


def _vmem_capacity_bytes():
    try:
        cap = getattr(pltpu.get_tpu_info(), "vmem_capacity_bytes", None)
        if cap:
            return int(cap)
    except Exception:
        pass
    # Conservative default = smallest per-TensorCore VMEM across generations (v7x: 64 MiB).
    return 64 * 1024 * 1024


def _pick_ff_chunk(ff_dims, max_chunk):
    """Largest multiple-of-128 divisor of ff_dims that is <= max_chunk (else full ff)."""
    if ff_dims <= max_chunk or ff_dims % 128 != 0:
        return ff_dims
    best, c = None, 128
    while c <= max_chunk:
        if ff_dims % c == 0:
            best = c
        c += 128
    return best if best is not None else ff_dims


def _pick_ff_tile(ff_dims, tile_ff_max):
    """Largest multiple-of-128 divisor of ff_dims that is <= tile_ff_max (else full ff)."""
    if ff_dims % 128 != 0:
        return ff_dims
    best, c = None, 128
    while c <= min(tile_ff_max, ff_dims):
        if ff_dims % c == 0:
            best = c
        c += 128
    return best if best is not None else ff_dims


def _token_tile_candidates(n_al, row_align, tile_n_max):
    top = max(row_align, min(tile_n_max, n_al) // row_align * row_align)
    cands = []
    for c in (top, 1024, 768, 512, 384, 256, 192, 128, 96, 64, 48, 32, 24, 16, 8):
        c = min(c, top) // row_align * row_align
        if c >= row_align and c not in cands:
            cands.append(c)
    return sorted(cands, reverse=True)


def _resident_vmem(tn, in_dims, ff_dims, ff_chunk, x_b, w_b, out_b, w_buf):
    weights = w_buf * (2 * in_dims * ff_dims + ff_dims + in_dims) * w_b
    io = 2 * tn * in_dims * (x_b + out_b)      # double-buffered x / out tiles
    acc = tn * in_dims * 4                     # f32 accumulator (scratch or o_ref)
    h = 2 * tn * ff_chunk * 4                  # f32 intermediate + compiler temps
    return weights + io + acc + h


def _tiled_vmem(tn, in_dims, tf, x_b, w_b, out_b, need_scratch, w_buf_b2):
    weights = 2 * (2 * in_dims * tf + tf) * w_b + w_buf_b2 * in_dims * w_b
    io = 2 * tn * in_dims * (x_b + out_b)
    acc = tn * in_dims * 4 if need_scratch else 0
    h = 2 * tn * tf * 4
    return weights + io + acc + h


# --------------------------------------------------------------------------- call builders


def _build_resident_call(n_pad, tn, in_dims, ff_dims, n_chunks, ff_chunk, out_dtype, *,
                         need_scratch, single_buffer, vmem_limit, cost):
    def const_spec(shape):
        ndim = len(shape)
        if single_buffer:
            # Constant-index blocks don't need double buffering -> halves weight VMEM.
            return pl.BlockSpec(shape, lambda i, _n=ndim: (0,) * _n,
                                pipeline_mode=pl.Buffered(1))
        return pl.BlockSpec(shape, lambda i, _n=ndim: (0,) * _n)

    in_specs = [
        pl.BlockSpec((tn, in_dims), lambda i: (i, 0)),        # x tile
        const_spec((n_chunks, in_dims, ff_chunk)),            # W1 (resident, chunked)
        const_spec((n_chunks, 1, ff_chunk)),                  # b1 (resident, chunked)
        const_spec((n_chunks, ff_chunk, in_dims)),            # W2 (resident, chunked)
        const_spec((1, in_dims)),                             # b2 (resident)
    ]
    scratch = [pltpu.VMEM((tn, in_dims), jnp.float32)] if need_scratch else []
    return pl.pallas_call(
        functools.partial(_ffn_resident_kernel, n_chunks=n_chunks),
        out_shape=jax.ShapeDtypeStruct((n_pad, in_dims), out_dtype),
        grid_spec=pltpu.PrefetchScalarGridSpec(
            num_scalar_prefetch=0,
            grid=(n_pad // tn,),
            in_specs=in_specs,
            out_specs=pl.BlockSpec((tn, in_dims), lambda i: (i, 0)),
            scratch_shapes=scratch,
        ),
        compiler_params=pltpu.CompilerParams(
            dimension_semantics=("parallel",),
            vmem_limit_bytes=vmem_limit,
        ),
        cost_estimate=cost,
    )


def _build_tiled_call(n_pad, tn, in_dims, ff_dims, tf, out_dtype, *,
                      need_scratch, single_buffer, vmem_limit, cost):
    if single_buffer:
        b2_spec = pl.BlockSpec((1, in_dims), lambda i, j: (0, 0),
                               pipeline_mode=pl.Buffered(1))
    else:
        b2_spec = pl.BlockSpec((1, in_dims), lambda i, j: (0, 0))
    in_specs = [
        pl.BlockSpec((tn, in_dims), lambda i, j: (i, 0)),     # x tile (constant over j)
        pl.BlockSpec((in_dims, tf), lambda i, j: (0, j)),     # W1 ff-slice
        pl.BlockSpec((1, tf), lambda i, j: (0, j)),           # b1 ff-slice
        pl.BlockSpec((tf, in_dims), lambda i, j: (j, 0)),     # W2 ff-slice
        b2_spec,                                              # b2 (constant)
    ]
    scratch = [pltpu.VMEM((tn, in_dims), jnp.float32)] if need_scratch else []
    return pl.pallas_call(
        _ffn_tiled_kernel,
        out_shape=jax.ShapeDtypeStruct((n_pad, in_dims), out_dtype),
        grid_spec=pltpu.PrefetchScalarGridSpec(
            num_scalar_prefetch=0,
            grid=(n_pad // tn, ff_dims // tf),
            in_specs=in_specs,
            out_specs=pl.BlockSpec((tn, in_dims), lambda i, j: (i, 0)),
            scratch_shapes=scratch,
        ),
        compiler_params=pltpu.CompilerParams(
            dimension_semantics=("parallel", "arbitrary"),
            vmem_limit_bytes=vmem_limit,
        ),
        cost_estimate=cost,
    )


# ------------------------------------------------------------------------------- wrapper


def feed_forward(x, w1, b1, w2, b2, *, tile_n_max=1024, tile_ff_max=512,
                 max_ff_chunk=1024, force_ff_tile=None, vmem_budget_frac=0.8):
    """FeedForward forward: fc2(GELU(dropout_eval(fc1(x)))).

    x: [..., in_dims]; w1: [in_dims, ff_dims]; b1: [ff_dims]; w2: [ff_dims, in_dims];
    b2: [in_dims].  Weights are stored [in, out] (i.e. nn.Linear.weight.T).  Pass bf16
    weights to use the bf16 MXU path; x is cast to the weight dtype in the wrapper and
    the output keeps x's original dtype.
    """
    orig_shape = x.shape
    in_dims = orig_shape[-1]
    ff_dims = w1.shape[1]
    assert w1.shape == (in_dims, ff_dims)
    assert w2.shape == (ff_dims, in_dims)
    assert b1.shape == (ff_dims,) and b2.shape == (in_dims,)

    out_dtype = x.dtype
    compute_dtype = w1.dtype
    x2 = x.reshape(-1, in_dims)
    n = x2.shape[0]
    if x2.dtype != compute_dtype:
        # Wrapper-side cast: halves x DMA/VMEM when weights are bf16 and removes a
        # per-grid-step VPU cast inside the kernel.  MXU numerics are unchanged.
        x2 = x2.astype(compute_dtype)

    x_b = jnp.dtype(compute_dtype).itemsize
    w_b = jnp.dtype(compute_dtype).itemsize
    out_b = jnp.dtype(out_dtype).itemsize
    need_scratch = jnp.dtype(out_dtype) != jnp.dtype(jnp.float32)

    # Per-generation VMEM budget with headroom (~51 MiB on v7x, ~102 MiB on v5e/v6e).
    budget = int(_vmem_capacity_bytes() * vmem_budget_frac)
    single_buffer = _single_buffer_supported()
    w_buf = 1 if single_buffer else 2

    # Sublane packing of the compute dtype: 8 rows (f32), 16 (bf16), 32 (8-bit).
    row_align = 8 * max(1, 4 // x_b)
    n_al = _round_up(max(n, 1), row_align)
    cands = _token_tile_candidates(n_al, row_align, tile_n_max)

    use_tiled = force_ff_tile is not None
    tn = None
    ff_chunk = n_chunks = tf = None

    if not use_tiled:
        # Prefer full weight residency: W1/W2 are DMA'd exactly once for the whole grid
        # instead of once per token tile.
        ff_chunk = _pick_ff_chunk(ff_dims, max_ff_chunk)
        n_chunks = ff_dims // ff_chunk if ff_dims % ff_chunk == 0 else 1
        if n_chunks == 1:
            ff_chunk = ff_dims
        for c in cands:
            if _resident_vmem(c, in_dims, ff_dims, ff_chunk, x_b, w_b, out_b, w_buf) <= budget:
                tn = c
                break
        use_tiled = tn is None

    if use_tiled:
        tf = force_ff_tile if force_ff_tile is not None else _pick_ff_tile(ff_dims, tile_ff_max)
        if tf <= 0 or ff_dims % tf != 0 or (tf != ff_dims and tf % 128 != 0):
            tf = ff_dims
        tn = None
        for c in cands:
            if _tiled_vmem(c, in_dims, tf, x_b, w_b, out_b, need_scratch, w_buf) <= budget:
                tn = c
                break
        if tn is None:
            tn = cands[-1]  # best effort with the smallest tile; compiler reports if unfit

    n_pad = _round_up(max(n, 1), tn)

    # v7x megacore: the "parallel" token axis is what gets split across the 2 TensorCores;
    # ensure >= 2 token tiles on the resident path (nearly free on 1-TC v5e/v6e).
    if (not use_tiled) and n_pad // tn < 2 and n_al >= 2 * row_align:
        tn = _round_up(_cdiv(n_al, 2), row_align)
        n_pad = _round_up(max(n, 1), tn)

    xp = x2 if n_pad == n else jnp.pad(x2, ((0, n_pad - n), (0, 0)))

    # Advisory cost estimate so XLA can schedule surrounding ops around the custom call.
    weight_bytes = (2 * in_dims * ff_dims + ff_dims + in_dims) * w_b
    cost = pl.CostEstimate(
        flops=4 * n_pad * in_dims * ff_dims,
        transcendentals=n_pad * ff_dims,
        bytes_accessed=n_pad * in_dims * (x_b + out_b)
        + weight_bytes * (1 if not use_tiled else n_pad // tn),
    )

    if not use_tiled:
        if n_chunks == 1:
            w1r = w1.reshape(1, in_dims, ff_dims)
            b1r = b1.reshape(1, 1, ff_dims)
            w2r = w2.reshape(1, ff_dims, in_dims)
        else:
            # Chunk the ff axis so the f32 intermediate is bounded to (tn, ff_chunk);
            # only W1 needs a real transpose (one-time, weight-sized traffic).
            w1r = w1.reshape(in_dims, n_chunks, ff_chunk).transpose(1, 0, 2)
            b1r = b1.reshape(n_chunks, 1, ff_chunk)
            w2r = w2.reshape(n_chunks, ff_chunk, in_dims)
        call = _build_resident_call(
            n_pad, tn, in_dims, ff_dims, n_chunks, ff_chunk, out_dtype,
            need_scratch=need_scratch, single_buffer=single_buffer,
            vmem_limit=budget, cost=cost)
        out = call(xp, w1r, b1r, w2r, b2.reshape(1, in_dims))
    else:
        call = _build_tiled_call(
            n_pad, tn, in_dims, ff_dims, tf, out_dtype,
            need_scratch=need_scratch, single_buffer=single_buffer,
            vmem_limit=budget, cost=cost)
        out = call(xp, w1, b1.reshape(1, ff_dims), w2, b2.reshape(1, in_dims))

    if n_pad != n:
        out = out[:n]
    return out.reshape(orig_shape)


# ------------------------------------------------------------------------------- testing


def init_params(key, in_dims, ff_dims, dtype=jnp.float32):
    """Deterministic init mimicking nn.Linear default (uniform +/- 1/sqrt(fan_in))."""
    k1, k2, k3, k4 = jax.random.split(key, 4)
    bound1 = 1.0 / math.sqrt(in_dims)
    bound2 = 1.0 / math.sqrt(ff_dims)
    w1 = jax.random.uniform(k1, (in_dims, ff_dims), dtype, -bound1, bound1)
    b1 = jax.random.uniform(k2, (ff_dims,), dtype, -bound1, bound1)
    w2 = jax.random.uniform(k3, (ff_dims, in_dims), dtype, -bound2, bound2)
    b2 = jax.random.uniform(k4, (in_dims,), dtype, -bound2, bound2)
    return w1, b1, w2, b2


def feed_forward_ref(x, w1, b1, w2, b2):
    h = x @ w1 + b1
    h = jax.nn.gelu(h, approximate=False)  # exact GELU; dropout is identity in eval
    return h @ w2 + b2


if __name__ == "__main__":
    # Small, lane-aligned config (in_dims / ff_dims multiples of 128 -> unmasked stores).
    batch, seq, in_dims, ff_dims = 2, 16, 128, 512
    key = jax.random.PRNGKey(0)
    kx, kp = jax.random.split(key)
    x = jax.random.normal(kx, (batch, seq, in_dims), jnp.float32)
    w1, b1, w2, b2 = init_params(kp, in_dims, ff_dims)

    ref = feed_forward_ref(x.reshape(-1, in_dims), w1, b1, w2, b2).reshape(x.shape)

    # 1) Default path: weights fully resident (single ff chunk), >=2 token tiles.
    out1 = jax.block_until_ready(feed_forward(x, w1, b1, w2, b2))
    assert out1.shape == x.shape and out1.dtype == x.dtype
    assert jnp.allclose(out1, ref, atol=1e-4, rtol=1e-4), "mismatch (resident path)"

    # 2) Resident path with in-kernel ff chunking (fori_loop over chunked weight blocks).
    out2 = jax.block_until_ready(feed_forward(x, w1, b1, w2, b2, max_ff_chunk=256))
    assert jnp.allclose(out2, ref, atol=1e-4, rtol=1e-4), "mismatch (chunked resident path)"

    # 3) ff-grid-tiled path, f32 output accumulated directly into o_ref (no scratch).
    out3 = jax.block_until_ready(
        feed_forward(x, w1, b1, w2, b2, force_ff_tile=256, tile_n_max=16))
    assert jnp.allclose(out3, ref, atol=1e-4, rtol=1e-4), "mismatch (ff-tiled path)"

    # 4) bf16 weights + bf16 x on the ff-tiled path (exercises the f32 scratch accumulator).
    xb = x.astype(jnp.bfloat16)
    w1b, b1b, w2b, b2b = (t.astype(jnp.bfloat16) for t in (w1, b1, w2, b2))
    refb = feed_forward_ref(
        xb.astype(jnp.float32).reshape(-1, in_dims),
        w1b.astype(jnp.float32), b1b.astype(jnp.float32),
        w2b.astype(jnp.float32), b2b.astype(jnp.float32)).reshape(x.shape)
    out4 = jax.block_until_ready(feed_forward(xb, w1b, b1b, w2b, b2b, force_ff_tile=256))
    assert out4.dtype == jnp.bfloat16
    assert jnp.allclose(out4.astype(jnp.float32), refb, atol=1e-1, rtol=5e-2), \
        "mismatch (bf16 ff-tiled path)"

    print("KERNEL_OK")
</pallas_src>

<mosaic_0001>
module attributes {stable_mosaic.version = 11 : i64} {
  func.func @_probe(%arg0: i32, %arg1: memref<8x128xf32, #tpu.memory_space<vmem>>, %arg2: memref<8x128xf32, #tpu.memory_space<vmem>>) attributes {dimension_semantics = [#tpu.dimension_semantics<arbitrary>], iteration_bounds = array<i64: 1>, scalar_prefetch = 0 : i64, scratch_operands = 0 : i64, tpu.core_type = #tpu.core_type<tc>, window_params = [{pipeline_mode = #tpu.pipeline_mode<synchronous>, transform_indices = @transform_0, window_bounds = array<i64: 8, 128>}, {pipeline_mode = #tpu.pipeline_mode<synchronous>, transform_indices = @transform_1, window_bounds = array<i64: 8, 128>}]} {
    %c0 = arith.constant 0 : index
    %c0_0 = arith.constant 0 : index
    %0 = vector.load %arg1[%c0, %c0_0] : memref<8x128xf32, #tpu.memory_space<vmem>>, vector<8x128xf32>
    %cst = arith.constant 1.000000e+00 : f32
    %1 = vector.broadcast %cst : f32 to vector<8x128xf32>
    %2 = arith.addf %0, %1 : vector<8x128xf32>
    %c0_1 = arith.constant 0 : index
    %c0_2 = arith.constant 0 : index
    %3 = vector.load %arg2[%c0_1, %c0_2] : memref<8x128xf32, #tpu.memory_space<vmem>>, vector<8x128xf32>
    tpu.vector_store %arg2[%c0_1, %c0_2], %2 {strides = array<i32>} : memref<8x128xf32, #tpu.memory_space<vmem>>, vector<8x128xf32>,
    return
  }
  func.func @transform_0(%arg0: i32) -> (i32, i32) {
    %c0_i32 = arith.constant 0 : i32
    %c0_i32_0 = arith.constant 0 : i32
    %c0_i32_1 = arith.constant 0 : i32
    return %c0_i32, %c0_i32_0 : i32, i32
  }
  func.func @transform_1(%arg0: i32) -> (i32, i32) {
    %c0_i32 = arith.constant 0 : i32
    %c0_i32_0 = arith.constant 0 : i32
    %c0_i32_1 = arith.constant 0 : i32
    return %c0_i32, %c0_i32_0 : i32, i32
  }
}

module attributes {stable_mosaic.version = 11 : i64} {
  func.func @_ffn_resident_kernel(%arg0: i32, %arg1: memref<16x128xf32, #tpu.memory_space<vmem>>, %arg2: memref<1x128x512xf32, #tpu.memory_space<vmem>>, %arg3: memref<1x1x512xf32, #tpu.memory_space<vmem>>, %arg4: memref<1x512x128xf32, #tpu.memory_space<vmem>>, %arg5: memref<1x128xf32, #tpu.memory_space<vmem>>, %arg6: memref<16x128xf32, #tpu.memory_space<vmem>>) attributes {dimension_semantics = [#tpu.dimension_semantics<parallel>], iteration_bounds = array<i64: 2>, scalar_prefetch = 0 : i64, scratch_operands = 0 : i64, tpu.core_type = #tpu.core_type<tc>, window_params = [{transform_indices = @transform_0, window_bounds = array<i64: 16, 128>}, {pipeline_mode = #tpu.pipeline_mode<synchronous>, transform_indices = @transform_1, window_bounds = array<i64: 1, 128, 512>}, {pipeline_mode = #tpu.pipeline_mode<synchronous>, transform_indices = @transform_2, window_bounds = array<i64: 1, 1, 512>}, {pipeline_mode = #tpu.pipeline_mode<synchronous>, transform_indices = @transform_3, window_bounds = array<i64: 1, 512, 128>}, {pipeline_mode = #tpu.pipeline_mode<synchronous>, transform_indices = @transform_4, window_bounds = array<i64: 1, 128>}, {transform_indices = @transform_5, window_bounds = array<i64: 16, 128>}]} {
    %c0 = arith.constant 0 : index
    %c0_0 = arith.constant 0 : index
    %0 = vector.load %arg1[%c0, %c0_0] : memref<16x128xf32, #tpu.memory_space<vmem>>, vector<16x128xf32>
    %c0_1 = arith.constant 0 : index
    %c0_2 = arith.constant 0 : index
    %1 = vector.load %arg5[%c0_1, %c0_2] : memref<1x128xf32, #tpu.memory_space<vmem>>, vector<1x128xf32>
    %2 = vector.shape_cast %1 : vector<1x128xf32> to vector<1x128xf32>
    %3 = vector.broadcast %2 : vector<1x128xf32> to vector<16x128xf32>
    %c0_3 = arith.constant 0 : index
    %c0_4 = arith.constant 0 : index
    %4 = vector.load %arg6[%c0_3, %c0_4] : memref<16x128xf32, #tpu.memory_space<vmem>>, vector<16x128xf32>
    tpu.vector_store %arg6[%c0_3, %c0_4], %3 {strides = array<i32>} : memref<16x128xf32, #tpu.memory_space<vmem>>, vector<16x128xf32>,
    %c0_5 = arith.constant 0 : index
    %c0_6 = arith.constant 0 : index
    %c0_7 = arith.constant 0 : index
    %5 = vector.load %arg2[%c0_5, %c0_6, %c0_7] : memref<1x128x512xf32, #tpu.memory_space<vmem>>, vector<1x128x512xf32>
    %6 = vector.shape_cast %5 : vector<1x128x512xf32> to vector<128x512xf32>
    %cst = arith.constant dense<0.000000e+00> : vector<16x512xf32>
    %7 = tpu.matmul %0, %6, %cst {dimension_numbers = #tpu.dot_dimension_numbers<[1], [0], [0], [1], [0, 0, 1, 1], [], []>} : vector<16x128xf32>, vector<128x512xf32>, vector<16x512xf32> -> vector<16x512xf32>
    %c0_8 = arith.constant 0 : index
    %c0_9 = arith.constant 0 : index
    %c0_10 = arith.constant 0 : index
    %8 = vector.load %arg3[%c0_8, %c0_9, %c0_10] : memref<1x1x512xf32, #tpu.memory_space<vmem>>, vector<1x1x512xf32>
    %9 = vector.shape_cast %8 : vector<1x1x512xf32> to vector<1x512xf32>
    %10 = vector.broadcast %9 : vector<1x512xf32> to vector<16x512xf32>
    %11 = arith.addf %7, %10 : vector<16x512xf32>
    %cst_11 = arith.constant 5.000000e-01 : f32
    %12 = vector.broadcast %cst_11 : f32 to vector<16x512xf32>
    %13 = arith.mulf %12, %11 : vector<16x512xf32>
    %cst_12 = arith.constant 0.707106769 : f32
    %14 = vector.broadcast %cst_12 : f32 to vector<16x512xf32>
    %15 = arith.mulf %11, %14 : vector<16x512xf32>
    %16 = math.erf %15 : vector<16x512xf32>
    %cst_13 = arith.constant 1.000000e+00 : f32
    %17 = vector.broadcast %cst_13 : f32 to vector<16x512xf32>
    %18 = arith.addf %17, %16 : vector<16x512xf32>
    %19 = arith.mulf %13, %18 : vector<16x512xf32>
    %c0_14 = arith.constant 0 : index
    %c0_15 = arith.constant 0 : index
    %20 = vector.load %arg6[%c0_14, %c0_15] : memref<16x128xf32, #tpu.memory_space<vmem>>, vector<16x128xf32>
    %c0_16 = arith.constant 0 : index
    %c0_17 = arith.constant 0 : index
    %c0_18 = arith.constant 0 : index
    %21 = vector.load %arg4[%c0_16, %c0_17, %c0_18] : memref<1x512x128xf32, #tpu.memory_space<vmem>>, vector<1x512x128xf32>
    %22 = vector.shape_cast %21 : vector<1x512x128xf32> to vector<512x128xf32>
    %cst_19 = arith.constant dense<0.000000e+00> : vector<16x128xf32>
    %23 = tpu.matmul %19, %22, %cst_19 {dimension_numbers = #tpu.dot_dimension_numbers<[1], [0], [0], [1], [0, 0, 1, 1], [], []>} : vector<16x512xf32>, vector<512x128xf32>, vector<16x128xf32> -> vector<16x128xf32>
    %24 = arith.addf %20, %23 : vector<16x128xf32>
    %c0_20 = arith.constant 0 : index
    %c0_21 = arith.constant 0 : index
    %25 = vector.load %arg6[%c0_20, %c0_21] : memref<16x128xf32, #tpu.memory_space<vmem>>, vector<16x128xf32>
    tpu.vector_store %arg6[%c0_20, %c0_21], %24 {strides = array<i32>} : memref<16x128xf32, #tpu.memory_space<vmem>>, vector<16x128xf32>,
    return
  }
  func.func @transform_0(%arg0: i32) -> (i32, i32) {
    %c0_i32 = arith.constant 0 : i32
    %c0_i32_0 = arith.constant 0 : i32
    return %arg0, %c0_i32 : i32, i32
  }
  func.func @transform_1(%arg0: i32) -> (i32, i32, i32) {
    %c0_i32 = arith.constant 0 : i32
    %c0_i32_0 = arith.constant 0 : i32
    %c0_i32_1 = arith.constant 0 : i32
    %c0_i32_2 = arith.constant 0 : i32
    return %c0_i32, %c0_i32_0, %c0_i32_1 : i32, i32, i32
  }
  func.func @transform_2(%arg0: i32) -> (i32, i32, i32) {
    %c0_i32 = arith.constant 0 : i32
    %c0_i32_0 = arith.constant 0 : i32
    %c0_i32_1 = arith.constant 0 : i32
    %c0_i32_2 = arith.constant 0 : i32
    return %c0_i32, %c0_i32_0, %c0_i32_1 : i32, i32, i32
  }
  func.func @transform_3(%arg0: i32) -> (i32, i32, i32) {
    %c0_i32 = arith.constant 0 : i32
    %c0_i32_0 = arith.constant 0 : i32
    %c0_i32_1 = arith.constant 0 : i32
    %c0_i32_2 = arith.constant 0 : i32
    return %c0_i32, %c0_i32_0, %c0_i32_1 : i32, i32, i32
  }
  func.func @transform_4(%arg0: i32) -> (i32, i32) {
    %c0_i32 = arith.constant 0 : i32
    %c0_i32_0 = arith.constant 0 : i32
    %c0_i32_1 = arith.constant 0 : i32
    return %c0_i32, %c0_i32_0 : i32, i32
  }
  func.func @transform_5(%arg0: i32) -> (i32, i32) {
    %c0_i32 = arith.constant 0 : i32
    %c0_i32_0 = arith.constant 0 : i32
    return %arg0, %c0_i32 : i32, i32
  }
}

</mosaic_0001>

<llo_original>
// kernel: tpu_custom_call.1
$region0: #{tpu_custom_call.1}
  #allocation0 [shape = 'u32[]', space=smem, size = 0x4, offset = 0x4, fixed_abs, tag = 'smem constant byte address 0x4 - core index']
  #allocation1 [shape = 'u32[144,128]{1,0:T(1,128)}', space=vmem, size = 0x12000, scoped, tag = 'internal scratch']
  %s0 = inlined_call_operand.hbm [shape: f32[8,128], index: 0, kind: input, shape index: {}]
  %s1 = inlined_call_operand.hbm [shape: f32[8,128], index: 1, kind: output, shape index: {}]
  %s2 = sld [smem:[#allocation0]]
  $region18: #{tpu_custom_call.1} parent=0
    _
  %s4 = ssub.s32 1, %s2
  %s5 = scalar_select 0, %s4, %s2
  $region1: #{tpu_custom_call.1} parent=0
    #allocation2 [shape = 'u8[4096]{0}', space=vmem, size = 0x1000, scoped, tag = 'input window, operand 0, single buffered']
    #allocation3 [shape = 's32[1]{0}', space=sflag, size = 0x4, scoped, tag = 'scoped memory for tpu_custom_call.1']
    #allocation4 [shape = 's32[1]{0}', space=sflag, size = 0x4, scoped, tag = 'scoped memory for tpu_custom_call.1']
    #allocation5 [shape = 'u8[4096]{0}', space=vmem, size = 0x1000, scoped, tag = 'output window, operand 0, single buffered']
    %6 = vsyncpa [#allocation3], 0
    %7 = vsyncpa [#allocation4], 0
    // Predicated region
    $region2: #{tpu_custom_call.1} parent=1 // pred_check
      _
    $region3: #{tpu_custom_call.1} parent=1 // pred_check_branch
      %9 = sbr.rel (0) target = $region5
    $region4: #{tpu_custom_call.1} parent=1 // pred_region
      %s11 = ssub.s32 128, 128
      %12 = vsyncadd [#allocation3], %s11
      %s14 = sshll.u32 [#allocation2], 4
      %s15 = int_to_ptr.vmem [resolvable:$true] %s14
      %17 = dma.hbm_to_vmem [thread:$0]  %s0, 128, %s15, [#allocation3]
    $region5: #{tpu_custom_call.1} parent=1 // pred_fallthru
      _
    // Predicated region
    $region6: #{tpu_custom_call.1} parent=1 // pred_check
      _
    $region7: #{tpu_custom_call.1} parent=1 // pred_check_branch
      %19 = sbr.rel (0) target = $region9
    $region8: #{tpu_custom_call.1} parent=1 // pred_region
      %20 = dma.done [#allocation3], 128
    $region9: #{tpu_custom_call.1} parent=1 // pred_fallthru
      _
    %v21 = vld [vmem:[#allocation2] sm:$0xff]
    %v22 = vadd.f32 %v21, 1.0
    %23 = vst [vmem:[#allocation5] sm:$0xff] %v22
    // Predicated region
    $region10: #{tpu_custom_call.1} parent=1 // pred_check
      _
    $region11: #{tpu_custom_call.1} parent=1 // pred_check_branch
      %25 = sbr.rel (0) target = $region13
    $region12: #{tpu_custom_call.1} parent=1 // pred_region
      %s27 = ssub.s32 128, 128
      %28 = vsyncadd [#allocation4], %s27
      %s30 = sshll.u32 [#allocation5], 4
      %s31 = int_to_ptr.vmem [resolvable:$true] %s30
      %33 = dma.vmem_to_hbm [thread:$0]  %s31, 128, %s1, [#allocation4]
    $region13: #{tpu_custom_call.1} parent=1 // pred_fallthru
      _
    // Predicated region
    $region14: #{tpu_custom_call.1} parent=1 // pred_check
      _
    $region15: #{tpu_custom_call.1} parent=1 // pred_check_branch
      %35 = sbr.rel (0) target = $region17
    $region16: #{tpu_custom_call.1} parent=1 // pred_region
      %36 = dma.done [#allocation4], 128
    $region17: #{tpu_custom_call.1} parent=1 // pred_fallthru
      _
    %37 = vsyncpa [#allocation3], 1
    %38 = vsyncpa [#allocation4], 1

// kernel: tpu_custom_call.1
$region0: #{tpu_custom_call.1}
  #allocation0 [shape = 'u32[]', space=smem, size = 0x4, offset = 0x4, fixed_abs, tag = 'smem constant byte address 0x4 - core index']
  #allocation1 [shape = 'u32[144,128]{1,0:T(1,128)}', space=vmem, size = 0x12000, scoped, tag = 'internal scratch']
  %s0 = inlined_call_operand.hbm [shape: f32[32,128], index: 0, kind: input, shape index: {}]
  %s1 = inlined_call_operand.hbm [shape: f32[1,128,512], index: 1, kind: input, shape index: {}]
  %s2 = inlined_call_operand.vmem [shape: f32[1,1,512], index: 2, kind: input, shape index: {}]
  %s3 = inlined_call_operand.hbm [shape: f32[1,512,128], index: 3, kind: input, shape index: {}]
  %s4 = inlined_call_operand.vmem [shape: f32[1,128], index: 4, kind: input, shape index: {}]
  %s5 = inlined_call_operand.hbm [shape: f32[32,128], index: 5, kind: output, shape index: {}]
  %s6 = sld [smem:[#allocation0]]
  $region65: #{tpu_custom_call.1} parent=0
    _
  %s8 = ssub.s32 1, %s6
  %s9 = scalar_select 0, %s8, %s6
  $region1: #{tpu_custom_call.1} parent=0
    #allocation2 [shape = 'u8[16384]{0}', space=vmem, size = 0x4000, scoped, tag = 'input window, operand 0']
    #allocation3 [shape = 's32[2]{0}', space=sflag, size = 0x8, scoped, tag = 'scoped memory for tpu_custom_call.1']
    #allocation4 [shape = 's32[2]{0}', space=sflag, size = 0x8, scoped, tag = 'scoped memory for tpu_custom_call.1']
    #allocation5 [shape = 'u8[262144]{0}', space=vmem, size = 0x40000, scoped, tag = 'input window, operand 1, single buffered']
    #allocation6 [shape = 's32[1]{0}', space=sflag, size = 0x4, scoped, tag = 'scoped memory for tpu_custom_call.1']
    #allocation7 [shape = 'u8[262144]{0}', space=vmem, size = 0x40000, scoped, tag = 'input window, operand 3, single buffered']
    #allocation8 [shape = 'u8[16384]{0}', space=vmem, size = 0x4000, scoped, tag = 'output window, operand 0']
    %10 = vsyncpa [#allocation3], 0
    %s11 = scalar_lea.sflag [#allocation3], 1
    %12 = vsyncpa %s11, 0
    %13 = vsyncpa [#allocation6], 0
    %14 = vsyncpa [#allocation4], 0
    %s15 = scalar_lea.sflag [#allocation4], 1
    %16 = vsyncpa %s15, 0
    loop: start=0, step=1, limit=4
    $region2: #{tpu_custom_call.1} parent=1 // loop_pre_header
      _
    $region3: #{tpu_custom_call.1} parent=1 // loop_header
      %s18 = sphi 0, %s22
      %p19 = scmp.ge.s32.totalorder %s18, 4
      %s28 = sphi 0, %s30
      %s31 = sphi 0, %s28
      %s32 = sphi 0, %s31
      %s48 = sphi 0, %s32
      %s52 = sphi 0, %s52
      %s54 = sphi 0, %s52
      %s55 = sphi 0, %s54
      %s69 = sphi 0, %s55
      %s73 = sphi 0, %s73
      %s75 = sphi 0, %s73
      %s76 = sphi 0, %s75
      %s90 = sphi 0, %s76
      %s94 = sphi 0, %s94
      %s96 = sphi 0, %s94
      %s97 = sphi 0, %s96
      %s111 = sphi 0, %s97
      %s115 = sphi 0, %s115
      %s117 = sphi 0, %s115
      %s118 = sphi 0, %s117
      %s132 = sphi 0, %s118
      %s138 = sphi 0, %s140
      %s141 = sphi 0, %s138
      %s142 = sphi 0, %s141
      %s158 = sphi 0, %s142
    $region4: #{tpu_custom_call.1} parent=1 // loop_header_branch
      %21 = sbr.rel (%p19) target = $region8
    $region5: #{tpu_custom_call.1} parent=1 // loop_body
      %s23 = ssub.s32 %s18, 1
      %s24 = ssub.s32 %s18, 2
      %s25 = sadd.s32 %s18, 1
      %s26 = ssub.s32 %s18, %s25
      %p27 = scmp.eq.s32.totalorder %s26, 0
      %s29 = sadd.s32 %s28, 1
      %s30 = scalar_select %p27, %s28, %s29
      %p33 = pneg %p27
      %p34 = scmp.eq.s32.totalorder %s18, 1
      %p35 = por %p33, %p34
      %p36 = scmp.ne.s32.totalorder %s28, %s31
      %p37 = scmp.eq.s32.totalorder %s18, 0
      %p38 = por %p36, %p37
      %p39 = scmp.ne.s32.totalorder %s28, %s31
      %p40 = scmp.eq.s32.totalorder %s23, 1
      %p41 = por %p39, %p40
      %p42 = scmp.ne.s32.totalorder %s31, %s32
      %p43 = scmp.eq.s32.totalorder %s23, 0
      %p44 = por %p42, %p43
      %p45 = scmp.ne.s32.totalorder %s31, %s32
      %p46 = scmp.eq.s32.totalorder %s24, 1
      %p47 = por %p45, %p46
      %p49 = scmp.ne.s32.totalorder %s32, %s48
      %p50 = scmp.eq.s32.totalorder %s24, 0
      %p51 = por %p49, %p50
      %s53 = sadd.s32 %s52, 1
      %p56 = scmp.eq.s32.totalorder %s18, 1
      %p57 = scmp.ne.s32.totalorder %s52, %s54
      %p58 = scmp.eq.s32.totalorder %s18, 0
      %p59 = por %p57, %p58
      %p60 = scmp.ne.s32.totalorder %s52, %s54
      %p61 = scmp.eq.s32.totalorder %s23, 1
      %p62 = por %p60, %p61
      %p63 = scmp.ne.s32.totalorder %s54, %s55
      %p64 = scmp.eq.s32.totalorder %s23, 0
      %p65 = por %p63, %p64
      %p66 = scmp.ne.s32.totalorder %s54, %s55
      %p67 = scmp.eq.s32.totalorder %s24, 1
      %p68 = por %p66, %p67
      %p70 = scmp.ne.s32.totalorder %s55, %s69
      %p71 = scmp.eq.s32.totalorder %s24, 0
      %p72 = por %p70, %p71
      %s74 = sadd.s32 %s73, 1
      %p77 = scmp.eq.s32.totalorder %s18, 1
      %p78 = scmp.ne.s32.totalorder %s73, %s75
      %p79 = scmp.eq.s32.totalorder %s18, 0
      %p80 = por %p78, %p79
      %p81 = scmp.ne.s32.totalorder %s73, %s75
      %p82 = scmp.eq.s32.totalorder %s23, 1
      %p83 = por %p81, %p82
      %p84 = scmp.ne.s32.totalorder %s75, %s76
      %p85 = scmp.eq.s32.totalorder %s23, 0
      %p86 = por %p84, %p85
      %p87 = scmp.ne.s32.totalorder %s75, %s76
      %p88 = scmp.eq.s32.totalorder %s24, 1
      %p89 = por %p87, %p88
      %p91 = scmp.ne.s32.totalorder %s76, %s90
      %p92 = scmp.eq.s32.totalorder %s24, 0
      %p93 = por %p91, %p92
      %s95 = sadd.s32 %s94, 1
      %p98 = scmp.eq.s32.totalorder %s18, 1
      %p99 = scmp.ne.s32.totalorder %s94, %s96
      %p100 = scmp.eq.s32.totalorder %s18, 0
      %p101 = por %p99, %p100
      %p102 = scmp.ne.s32.totalorder %s94, %s96
      %p103 = scmp.eq.s32.totalorder %s23, 1
      %p104 = por %p102, %p103
      %p105 = scmp.ne.s32.totalorder %s96, %s97
      %p106 = scmp.eq.s32.totalorder %s23, 0
      %p107 = por %p105, %p106
      %p108 = scmp.ne.s32.totalorder %s96, %s97
      %p109 = scmp.eq.s32.totalorder %s24, 1
      %p110 = por %p108, %p109
      %p112 = scmp.ne.s32.totalorder %s97, %s111
      %p113 = scmp.eq.s32.totalorder %s24, 0
      %p114 = por %p112, %p113
      %s116 = sadd.s32 %s115, 1
      %p119 = scmp.eq.s32.totalorder %s18, 1
      %p120 = scmp.ne.s32.totalorder %s115, %s117
      %p121 = scmp.eq.s32.totalorder %s18, 0
      %p122 = por %p120, %p121
      %p123 = scmp.ne.s32.totalorder %s115, %s117
      %p124 = scmp.eq.s32.totalorder %s23, 1
      %p125 = por %p123, %p124
      %p126 = scmp.ne.s32.totalorder %s117, %s118
      %p127 = scmp.eq.s32.totalorder %s23, 0
      %p128 = por %p126, %p127
      %p129 = scmp.ne.s32.totalorder %s117, %s118
      %p130 = scmp.eq.s32.totalorder %s24, 1
      %p131 = por %p129, %p130
      %p133 = scmp.ne.s32.totalorder %s118, %s132
      %p134 = scmp.eq.s32.totalorder %s24, 0
      %p135 = por %p133, %p134
      %s136 = ssub.s32 %s18, %s25
      %p137 = scmp.eq.s32.totalorder %s136, 0
      %s139 = sadd.s32 %s138, 1
      %s140 = scalar_select %p137, %s138, %s139
      %p143 = pneg %p137
      %p144 = scmp.eq.s32.totalorder %s18, 1
      %p145 = por %p143, %p144
      %p146 = scmp.ne.s32.totalorder %s138, %s141
      %p147 = scmp.eq.s32.totalorder %s18, 0
      %p148 = por %p146, %p147
      %p149 = scmp.ne.s32.totalorder %s138, %s141
      %p150 = scmp.eq.s32.totalorder %s23, 1
      %p151 = por %p149, %p150
      %p152 = scmp.ne.s32.totalorder %s141, %s142
      %p153 = scmp.eq.s32.totalorder %s23, 0
      %p154 = por %p152, %p153
      %p155 = scmp.ne.s32.totalorder %s141, %s142
      %p156 = scmp.eq.s32.totalorder %s24, 1
      %p157 = por %p155, %p156
      %p159 = scmp.ne.s32.totalorder %s142, %s158
      %p160 = scmp.eq.s32.totalorder %s24, 0
      %p161 = por %p159, %p160
      %p162 = scmp.le.s32.totalorder 1, %s18
      %p163 = scmp.lt.s32.totalorder %s18, 3
      %p164 = pnand %p162, %p163
      %p165 = pneg %p164
      // Predicated region
      $region9: #{tpu_custom_call.1} parent=5 // pred_check
        _
      $region10: #{tpu_custom_call.1} parent=5 // pred_check_branch
        %167 = sbr.rel (%p164) target = $region12
      $region11: #{tpu_custom_call.1} parent=5 // pred_region
        %s168 = ssub.s32 %s18, 1
        // Predicated region
        $region13: #{tpu_custom_call.1} parent=11 // pred_check
          %p169 = pneg %p65
        $region14: #{tpu_custom_call.1} parent=11 // pred_check_branch
          %171 = sbr.rel (%p169) target = $region16
        $region15: #{tpu_custom_call.1} parent=11 // pred_region
          %s173 = ssub.s32 8192, 8192
          %174 = vsyncadd [#allocation6], %s173
          %s175 = sshll.u32 [#allocation5], 4
          %s176 = int_to_ptr.vmem [resolvable:$true] %s175
          %181 = dma.hbm_to_vmem [thread:$0]  %s1, 8192, %s176, [#allocation6], 512, 512, 32
        $region16: #{tpu_custom_call.1} parent=11 // pred_fallthru
          _
        // Predicated region
        $region17: #{tpu_custom_call.1} parent=11 // pred_check
          %p182 = pneg %p86
        $region18: #{tpu_custom_call.1} parent=11 // pred_check_branch
          %184 = sbr.rel (%p182) target = $region20
        $region19: #{tpu_custom_call.1} parent=11 // pred_region
          _
        $region20: #{tpu_custom_call.1} parent=11 // pred_fallthru
          _
        // Predicated region
        $region21: #{tpu_custom_call.1} parent=11 // pred_check
          %p185 = pneg %p107
        $region22: #{tpu_custom_call.1} parent=11 // pred_check_branch
          %187 = sbr.rel (%p185) target = $region24
        $region23: #{tpu_custom_call.1} parent=11 // pred_region
          %s189 = ssub.s32 8192, 8192
          %190 = vsyncadd [#allocation6], %s189
          %s191 = sshll.u32 [#allocation7], 4
          %s192 = int_to_ptr.vmem [resolvable:$true] %s191
          %197 = dma.hbm_to_vmem [thread:$0]  %s3, 8192, %s192, [#allocation6], 128, 128, 8
        $region24: #{tpu_custom_call.1} parent=11 // pred_fallthru
          _
        // Predicated region
        $region25: #{tpu_custom_call.1} parent=11 // pred_check
          %p198 = pneg %p128
        $region26: #{tpu_custom_call.1} parent=11 // pred_check_branch
          %200 = sbr.rel (%p198) target = $region28
        $region27: #{tpu_custom_call.1} parent=11 // pred_region
          _
        $region28: #{tpu_custom_call.1} parent=11 // pred_fallthru
          _
      $region12: #{tpu_custom_call.1} parent=5 // pred_fallthru
        _
      %p201 = scmp.lt.s32.totalorder %s18, 2
      // Predicated region
      $region29: #{tpu_custom_call.1} parent=5 // pred_check
        %p202 = pneg %p201
      $region30: #{tpu_custom_call.1} parent=5 // pred_check_branch
        %204 = sbr.rel (%p202) target = $region32
      $region31: #{tpu_custom_call.1} parent=5 // pred_region
        // Predicated region
        $region33: #{tpu_custom_call.1} parent=31 // pred_check
          %p205 = pneg %p38
        $region34: #{tpu_custom_call.1} parent=31 // pred_check_branch
          %207 = sbr.rel (%p205) target = $region36
        $region35: #{tpu_custom_call.1} parent=31 // pred_region
          %s208 = sand.u32 %s28, 1
          %s209 = scalar_lea.sflag [#allocation3], %s208
          %s210 = sand.u32 %s28, 1
          %s211 = smul.addr %s210, 16
          %s212 = scalar_lea.vmem [#allocation2], %s211
          %s213 = smul.u32 2, %s18
          %s215 = ssub.s32 256, 256
          %216 = vsyncadd %s209, %s215
          %s217 = smul.addr %s213, 128
          %s218 = scalar_lea.hbm %s0, %s217
          %s219 = sshll.u32 %s212, 4
          %s220 = int_to_ptr.vmem [resolvable:$true] %s219
          %225 = dma.hbm_to_vmem [thread:$0]  %s218, 256, %s220, %s209, 128, 128, 8
        $region36: #{tpu_custom_call.1} parent=31 // pred_fallthru
          _
      $region32: #{tpu_custom_call.1} parent=5 // pred_fallthru
        _
      %p226 = scmp.le.s32.totalorder 1, %s18
      %p227 = scmp.lt.s32.totalorder %s18, 3
      %p228 = pnand %p226, %p227
      %p229 = pneg %p228
      // Predicated region
      $region37: #{tpu_custom_call.1} parent=5 // pred_check
        _
      $region38: #{tpu_custom_call.1} parent=5 // pred_check_branch
        %231 = sbr.rel (%p228) target = $region40
      $region39: #{tpu_custom_call.1} parent=5 // pred_region
        %s232 = ssub.s32 %s18, 1
        %s233 = sand.u32 %s31, 1
        %s234 = scalar_lea.sflag [#allocation3], %s233
        %s235 = sand.u32 %s31, 1
        %s236 = smul.addr %s235, 16
        %s237 = scalar_lea.vmem [#allocation2], %s236
        // Predicated region
        $region41: #{tpu_custom_call.1} parent=39 // pred_check
          %p238 = pneg %p44
        $region42: #{tpu_custom_call.1} parent=39 // pred_check_branch
          %240 = sbr.rel (%p238) target = $region44
        $region43: #{tpu_custom_call.1} parent=39 // pred_region
          %241 = dma.done %s234, 256
        $region44: #{tpu_custom_call.1} parent=39 // pred_fallthru
          _
        // Predicated region
        $region45: #{tpu_custom_call.1} parent=39 // pred_check
          %p242 = pneg %p65
        $region46: #{tpu_custom_call.1} parent=39 // pred_check_branch
          %244 = sbr.rel (%p242) target = $region48
        $region47: #{tpu_custom_call.1} parent=39 // pred_region
          %245 = dma.done [#allocation6], 8192
        $region48: #{tpu_custom_call.1} parent=39 // pred_fallthru
          _
        // Predicated region
        $region49: #{tpu_custom_call.1} parent=39 // pred_check
          %p246 = pneg %p107
        $region50: #{tpu_custom_call.1} parent=39 // pred_check_branch
          %248 = sbr.rel (%p246) target = $region52
        $region51: #{tpu_custom_call.1} parent=39 // pred_region
          %249 = dma.done [#allocation6], 8192
        $region52: #{tpu_custom_call.1} parent=39 // pred_fallthru
          _
        %s250 = sand.u32 %s31, 1
        %s251 = scalar_lea.sflag [#allocation3], %s250
        %s252 = sand.u32 %s31, 1
        %s253 = smul.addr %s252, 16
        %s254 = scalar_lea.vmem [#allocation2], %s253
        %p255 = pneg %p44
        %p256 = pneg %p41
        %p257 = pneg %p65
        %p258 = pneg %p62
        %p259 = pneg %p86
        %p260 = pneg %p83
        %p261 = pneg %p107
        %p262 = pneg %p104
        %p263 = pneg %p128
        %p264 = pneg %p125
        %p265 = pneg %p154
        %p266 = pneg %p151
        %s267 = sand.u32 %s141, 1
        %s268 = scalar_lea.sflag [#allocation4], %s267
        %s269 = sand.u32 %s141, 1
        %s270 = smul.addr %s269, 16
        %s271 = scalar_lea.vmem [#allocation8], %s270
        %s272 = smul.u32 2, %s23
        %s273 = smul.u32 2, %s23
        %v274 = vld [vmem:[%s237] sm:$0xff]
        %v275 = vld [vmem:[%s237 + $0x8] sm:$0xff]
        %v276 = vld [vmem:[%s4] sm:$0x1]
        %v278 = vlaneseq
        %v279 = vshrl.u32 %v278, 7
        %v280 = vsub.s32 0, %v279
        %v281 = vrot.slane %v276, %v280
        %283 = vst [vmem:[%s271] sm:$0xff] %v281
        %284 = vst [vmem:[%s271 + $0x8] sm:$0xff] %v281
        %v285 = vld [vmem:[#allocation5] sm:$0xff]
        %v286 = vld [vmem:[#allocation5 + $0x8] sm:$0xff]
        %v287 = vld [vmem:[#allocation5 + $0x10] sm:$0xff]
        %v288 = vld [vmem:[#allocation5 + $0x18] sm:$0xff]
        %v289 = vld [vmem:[#allocation5 + $0x20] sm:$0xff]
        %v290 = vld [vmem:[#allocation5 + $0x28] sm:$0xff]
        %v291 = vld [vmem:[#allocation5 + $0x30] sm:$0xff]
        %v292 = vld [vmem:[#allocation5 + $0x38] sm:$0xff]
        %v293 = vld [vmem:[#allocation5 + $0x40] sm:$0xff]
        %v294 = vld [vmem:[#allocation5 + $0x48] sm:$0xff]
        %v295 = vld [vmem:[#allocation5 + $0x50] sm:$0xff]
        %v296 = vld [vmem:[#allocation5 + $0x58] sm:$0xff]
        %v297 = vld [vmem:[#allocation5 + $0x60] sm:$0xff]
        %v298 = vld [vmem:[#allocation5 + $0x68] sm:$0xff]
        %v299 = vld [vmem:[#allocation5 + $0x70] sm:$0xff]
        %v300 = vld [vmem:[#allocation5 + $0x78] sm:$0xff]
        %v301 = vld [vmem:[#allocation5 + $0x80] sm:$0xff]
        %v302 = vld [vmem:[#allocation5 + $0x88] sm:$0xff]
        %v303 = vld [vmem:[#allocation5 + $0x90] sm:$0xff]
        %v304 = vld [vmem:[#allocation5 + $0x98] sm:$0xff]
        %v305 = vld [vmem:[#allocation5 + $0xa0] sm:$0xff]
        %v306 = vld [vmem:[#allocation5 + $0xa8] sm:$0xff]
        %v307 = vld [vmem:[#allocation5 + $0xb0] sm:$0xff]
        %v308 = vld [vmem:[#allocation5 + $0xb8] sm:$0xff]
        %v309 = vld [vmem:[#allocation5 + $0xc0] sm:$0xff]
        %v310 = vld [vmem:[#allocation5 + $0xc8] sm:$0xff]
        %v311 = vld [vmem:[#allocation5 + $0xd0] sm:$0xff]
        %v312 = vld [vmem:[#allocation5 + $0xd8] sm:$0xff]
        %v313 = vld [vmem:[#allocation5 + $0xe0] sm:$0xff]
        %v314 = vld [vmem:[#allocation5 + $0xe8] sm:$0xff]
        %v315 = vld [vmem:[#allocation5 + $0xf0] sm:$0xff]
        %v316 = vld [vmem:[#allocation5 + $0xf8] sm:$0xff]
        %v317 = vld [vmem:[#allocation5 + $0x100] sm:$0xff]
        %v318 = vld [vmem:[#allocation5 + $0x108] sm:$0xff]
        %v319 = vld [vmem:[#allocation5 + $0x110] sm:$0xff]
        %v320 = vld [vmem:[#allocation5 + $0x118] sm:$0xff]
        %v321 = vld [vmem:[#allocation5 + $0x120] sm:$0xff]
        %v322 = vld [vmem:[#allocation5 + $0x128] sm:$0xff]
        %v323 = vld [vmem:[#allocation5 + $0x130] sm:$0xff]
        %v324 = vld [vmem:[#allocation5 + $0x138] sm:$0xff]
        %v325 = vld [vmem:[#allocation5 + $0x140] sm:$0xff]
        %v326 = vld [vmem:[#allocation5 + $0x148] sm:$0xff]
        %v327 = vld [vmem:[#allocation5 + $0x150] sm:$0xff]
        %v328 = vld [vmem:[#allocation5 + $0x158] sm:$0xff]
        %v329 = vld [vmem:[#allocation5 + $0x160] sm:$0xff]
        %v330 = vld [vmem:[#allocation5 + $0x168] sm:$0xff]
        %v331 = vld [vmem:[#allocation5 + $0x170] sm:$0xff]
        %v332 = vld [vmem:[#allocation5 + $0x178] sm:$0xff]
        %v333 = vld [vmem:[#allocation5 + $0x180] sm:$0xff]
        %v334 = vld [vmem:[#allocation5 + $0x188] sm:$0xff]
        %v335 = vld [vmem:[#allocation5 + $0x190] sm:$0xff]
        %v336 = vld [vmem:[#allocation5 + $0x198] sm:$0xff]
        %v337 = vld [vmem:[#allocation5 + $0x1a0] sm:$0xff]
        %v338 = vld [vmem:[#allocation5 + $0x1a8] sm:$0xff]
        %v339 = vld [vmem:[#allocation5 + $0x1b0] sm:$0xff]
        %v340 = vld [vmem:[#allocation5 + $0x1b8] sm:$0xff]
        %v341 = vld [vmem:[#allocation5 + $0x1c0] sm:$0xff]
        %v342 = vld [vmem:[#allocation5 + $0x1c8] sm:$0xff]
        %v343 = vld [vmem:[#allocation5 + $0x1d0] sm:$0xff]
        %v344 = vld [vmem:[#allocation5 + $0x1d8] sm:$0xff]
        %v345 = vld [vmem:[#allocation5 + $0x1e0] sm:$0xff]
        %v346 = vld [vmem:[#allocation5 + $0x1e8] sm:$0xff]
        %v347 = vld [vmem:[#allocation5 + $0x1f0] sm:$0xff]
        %v348 = vld [vmem:[#allocation5 + $0x1f8] sm:$0xff]
        %v349 = vld [vmem:[%s2] sm:$0xf]
        %v351 = vlaneseq
        %v352 = vshrl.u32 %v351, 7
        %v353 = vsub.s32 0, %v352
        %v354 = vrot.slane %v349, %v353
        %v355 = vlaneseq
        %v356 = vshrl.u32 %v355, 7
        %v357 = vsub.s32 1, %v356
        %v358 = vrot.slane %v349, %v357
        %v359 = vlaneseq
        %v360 = vshrl.u32 %v359, 7
        %v361 = vsub.s32 2, %v360
        %v362 = vrot.slane %v349, %v361
        %v363 = vlaneseq
        %v364 = vshrl.u32 %v363, 7
        %v365 = vsub.s32 3, %v364
        %v366 = vrot.slane %v349, %v365
        %371 = vmatprep.subr.mxu0 %v286
        %372 = vmatpush1.msra.mxu0 %v285
        %373 = vmatprep.subr.mxu0 %v290
        %374 = vmatpush1.msra.mxu0 %v289
        %375 = vmatprep.subr.mxu0 %v294
        %376 = vmatpush1.msra.mxu0 %v293
        %377 = vmatprep.subr.mxu0 %v298
        %378 = vmatpush1.msra.mxu0 %v297
        %379 = vmatprep.subr.mxu0 %v302
        %380 = vmatpush1.msra.mxu0 %v301
        %381 = vmatprep.subr.mxu0 %v306
        %382 = vmatpush1.msra.mxu0 %v305
        %383 = vmatprep.subr.mxu0 %v310
        %384 = vmatpush1.msra.mxu0 %v309
        %385 = vmatprep.subr.mxu0 %v314
        %386 = vmatpush1.msra.mxu0 %v313
        %387 = vmatprep.subr.mxu0 %v318
        %388 = vmatpush1.msra.mxu0 %v317
        %389 = vmatprep.subr.mxu0 %v322
        %390 = vmatpush1.msra.mxu0 %v321
        %391 = vmatprep.subr.mxu0 %v326
        %392 = vmatpush1.msra.mxu0 %v325
        %393 = vmatprep.subr.mxu0 %v330
        %394 = vmatpush1.msra.mxu0 %v329
        %395 = vmatprep.subr.mxu0 %v334
        %396 = vmatpush1.msra.mxu0 %v333
        %397 = vmatprep.subr.mxu0 %v338
        %398 = vmatpush1.msra.mxu0 %v337
        %399 = vmatprep.subr.mxu0 %v342
        %400 = vmatpush1.msra.mxu0 %v341
        %401 = vmatprep.subr.mxu0 %v346
        %402 = vmatpush1.msra.mxu0 %v345
        %403 = vmatprep.subr.mxu0 0.0
        %404 = vmatpush1.msra.mxu0 0.0
        %405 = vmatprep.subr.mxu0 0.0
        %406 = vmatpush1.msra.mxu0 0.0
        %407 = vmatprep.subr.mxu0 0.0
        %408 = vmatpush1.msra.mxu0 0.0
        %409 = vmatprep.subr.mxu0 0.0
        %410 = vmatpush1.msra.mxu0 0.0
        %411 = vmatprep.subr.mxu0 0.0
        %412 = vmatpush1.msra.mxu0 0.0
        %413 = vmatprep.subr.mxu0 0.0
        %414 = vmatpush1.msra.mxu0 0.0
        %415 = vmatprep.subr.mxu0 0.0
        %416 = vmatpush1.msra.mxu0 0.0
        %417 = vmatprep.subr.mxu0 0.0
        %418 = vmatpush1.msra.mxu0 0.0
        %419 = vmatprep.subr.mxu0 0.0
        %420 = vmatpush1.msra.mxu0 0.0
        %421 = vmatprep.subr.mxu0 0.0
        %422 = vmatpush1.msra.mxu0 0.0
        %423 = vmatprep.subr.mxu0 0.0
        %424 = vmatpush1.msra.mxu0 0.0
        %425 = vmatprep.subr.mxu0 0.0
        %426 = vmatpush1.msra.mxu0 0.0
        %427 = vmatprep.subr.mxu0 0.0
        %428 = vmatpush1.msra.mxu0 0.0
        %429 = vmatprep.subr.mxu0 0.0
        %430 = vmatpush1.msra.mxu0 0.0
        %431 = vmatprep.subr.mxu0 0.0
        %432 = vmatpush1.msra.mxu0 0.0
        %433 = vmatprep.subr.mxu0 0.0
        %434 = vmatpush1.msra.mxu0 0.0
        %435 = vmatprep.mubr.f32.mxu0 0.0
        %436 = vmatmul.mubr.f32.gmra.mrb[0].mxu0 %v274
        %v437 = vpop.f32.mrb[0].mxu0
        %v438 = vadd.f32 %v354, %v437
        %v439 = vpop.f32.mrb[0].mxu0
        %v440 = vadd.f32 %v358, %v439
        %441 = vmatprep.mubr.f32.mxu0 0.0
        %442 = vmatmul.mubr.f32.gmra.mrb[0].mxu0 %v275
        %v443 = vpop.f32.mrb[0].mxu0
        %v444 = vadd.f32 %v354, %v443
        %v445 = vpop.f32.mrb[0].mxu0
        %v446 = vadd.f32 %v358, %v445
        %447 = vdwg.mxu0
        %448 = vmatprep.subr.mxu0 %v288
        %449 = vmatpush1.msra.mxu0 %v287
        %450 = vmatprep.subr.mxu0 %v292
        %451 = vmatpush1.msra.mxu0 %v291
        %452 = vmatprep.subr.mxu0 %v296
        %453 = vmatpush1.msra.mxu0 %v295
        %454 = vmatprep.subr.mxu0 %v300
        %455 = vmatpush1.msra.mxu0 %v299
        %456 = vmatprep.subr.mxu0 %v304
        %457 = vmatpush1.msra.mxu0 %v303
        %458 = vmatprep.subr.mxu0 %v308
        %459 = vmatpush1.msra.mxu0 %v307
        %460 = vmatprep.subr.mxu0 %v312
        %461 = vmatpush1.msra.mxu0 %v311
        %462 = vmatprep.subr.mxu0 %v316
        %463 = vmatpush1.msra.mxu0 %v315
        %464 = vmatprep.subr.mxu0 %v320
        %465 = vmatpush1.msra.mxu0 %v319
        %466 = vmatprep.subr.mxu0 %v324
        %467 = vmatpush1.msra.mxu0 %v323
        %468 = vmatprep.subr.mxu0 %v328
        %469 = vmatpush1.msra.mxu0 %v327
        %470 = vmatprep.subr.mxu0 %v332
        %471 = vmatpush1.msra.mxu0 %v331
        %472 = vmatprep.subr.mxu0 %v336
        %473 = vmatpush1.msra.mxu0 %v335
        %474 = vmatprep.subr.mxu0 %v340
        %475 = vmatpush1.msra.mxu0 %v339
        %476 = vmatprep.subr.mxu0 %v344
        %477 = vmatpush1.msra.mxu0 %v343
        %478 = vmatprep.subr.mxu0 %v348
        %479 = vmatpush1.msra.mxu0 %v347
        %480 = vmatprep.subr.mxu0 0.0
        %481 = vmatpush1.msra.mxu0 0.0
        %482 = vmatprep.subr.mxu0 0.0
        %483 = vmatpush1.msra.mxu0 0.0
        %484 = vmatprep.subr.mxu0 0.0
        %485 = vmatpush1.msra.mxu0 0.0
        %486 = vmatprep.subr.mxu0 0.0
        %487 = vmatpush1.msra.mxu0 0.0
        %488 = vmatprep.subr.mxu0 0.0
        %489 = vmatpush1.msra.mxu0 0.0
        %490 = vmatprep.subr.mxu0 0.0
        %491 = vmatpush1.msra.mxu0 0.0
        %492 = vmatprep.subr.mxu0 0.0
        %493 = vmatpush1.msra.mxu0 0.0
        %494 = vmatprep.subr.mxu0 0.0
        %495 = vmatpush1.msra.mxu0 0.0
        %496 = vmatprep.subr.mxu0 0.0
        %497 = vmatpush1.msra.mxu0 0.0
        %498 = vmatprep.subr.mxu0 0.0
        %499 = vmatpush1.msra.mxu0 0.0
        %500 = vmatprep.subr.mxu0 0.0
        %501 = vmatpush1.msra.mxu0 0.0
        %502 = vmatprep.subr.mxu0 0.0
        %503 = vmatpush1.msra.mxu0 0.0
        %504 = vmatprep.subr.mxu0 0.0
        %505 = vmatpush1.msra.mxu0 0.0
        %506 = vmatprep.subr.mxu0 0.0
        %507 = vmatpush1.msra.mxu0 0.0
        %508 = vmatprep.subr.mxu0 0.0
        %509 = vmatpush1.msra.mxu0 0.0
        %510 = vmatprep.subr.mxu0 0.0
        %511 = vmatpush1.msra.mxu0 0.0
        %512 = vmatprep.mubr.f32.mxu0 0.0
        %513 = vmatmul.mubr.f32.gmra.mrb[0].mxu0 %v274
        %v514 = vpop.f32.mrb[0].mxu0
        %v515 = vadd.f32 %v362, %v514
        %v516 = vpop.f32.mrb[0].mxu0
        %v517 = vadd.f32 %v366, %v516
        %518 = vmatprep.mubr.f32.mxu0 0.0
        %519 = vmatmul.mubr.f32.gmra.mrb[0].mxu0 %v275
        %v520 = vpop.f32.mrb[0].mxu0
        %v521 = vadd.f32 %v362, %v520
        %v522 = vpop.f32.mrb[0].mxu0
        %v523 = vadd.f32 %v366, %v522
        %524 = vdwg.mxu0
        %v525 = vmul.f32 %v438, 0.5
        %v526 = vmul.f32 %v440, 0.5
        %v527 = vmul.f32 %v515, 0.5
        %v528 = vmul.f32 %v517, 0.5
        %v529 = vmul.f32 %v444, 0.5
        %v530 = vmul.f32 %v446, 0.5
        %v531 = vmul.f32 %v521, 0.5
        %v532 = vmul.f32 %v523, 0.5
        %v533 = vmul.f32 %v438, 0.70710677
        %v534 = vmul.f32 %v440, 0.70710677
        %v535 = vmul.f32 %v515, 0.70710677
        %v536 = vmul.f32 %v517, 0.70710677
        %v537 = vmul.f32 %v444, 0.70710677
        %v538 = vmul.f32 %v446, 0.70710677
        %v539 = vmul.f32 %v521, 0.70710677
        %v540 = vmul.f32 %v523, 0.70710677
        %v541 = verf.f32.pop %v533
        %v542 = verf.f32.pop %v534
        %v543 = verf.f32.pop %v535
        %v544 = verf.f32.pop %v536
        %v545 = verf.f32.pop %v537
        %v546 = verf.f32.pop %v538
        %v547 = verf.f32.pop %v539
        %v548 = verf.f32.pop %v540
        %v549 = vadd.f32 %v541, 1.0
        %v550 = vadd.f32 %v542, 1.0
        %v551 = vadd.f32 %v543, 1.0
        %v552 = vadd.f32 %v544, 1.0
        %v553 = vadd.f32 %v545, 1.0
        %v554 = vadd.f32 %v546, 1.0
        %v555 = vadd.f32 %v547, 1.0
        %v556 = vadd.f32 %v548, 1.0
        %v557 = vmul.f32 %v525, %v549
        %v558 = vmul.f32 %v526, %v550
        %v559 = vmul.f32 %v527, %v551
        %v560 = vmul.f32 %v528, %v552
        %v561 = vmul.f32 %v529, %v553
        %v562 = vmul.f32 %v530, %v554
        %v563 = vmul.f32 %v531, %v555
        %v564 = vmul.f32 %v532, %v556
        %v565 = vld [vmem:[%s271] sm:$0xff]
        %v566 = vld [vmem:[%s271 + $0x8] sm:$0xff]
        %v567 = vld [vmem:[#allocation7] sm:$0xff]
        %v568 = vld [vmem:[#allocation7 + $0x8] sm:$0xff]
        %v569 = vld [vmem:[#allocation7 + $0x10] sm:$0xff]
        %v570 = vld [vmem:[#allocation7 + $0x18] sm:$0xff]
        %v571 = vld [vmem:[#allocation7 + $0x20] sm:$0xff]
        %v572 = vld [vmem:[#allocation7 + $0x28] sm:$0xff]
        %v573 = vld [vmem:[#allocation7 + $0x30] sm:$0xff]
        %v574 = vld [vmem:[#allocation7 + $0x38] sm:$0xff]
        %v575 = vld [vmem:[#allocation7 + $0x40] sm:$0xff]
        %v576 = vld [vmem:[#allocation7 + $0x48] sm:$0xff]
        %v577 = vld [vmem:[#allocation7 + $0x50] sm:$0xff]
        %v578 = vld [vmem:[#allocation7 + $0x58] sm:$0xff]
        %v579 = vld [vmem:[#allocation7 + $0x60] sm:$0xff]
        %v580 = vld [vmem:[#allocation7 + $0x68] sm:$0xff]
        %v581 = vld [vmem:[#allocation7 + $0x70] sm:$0xff]
        %v582 = vld [vmem:[#allocation7 + $0x78] sm:$0xff]
        %v583 = vld [vmem:[#allocation7 + $0x80] sm:$0xff]
        %v584 = vld [vmem:[#allocation7 + $0x88] sm:$0xff]
        %v585 = vld [vmem:[#allocation7 + $0x90] sm:$0xff]
        %v586 = vld [vmem:[#allocation7 + $0x98] sm:$0xff]
        %v587 = vld [vmem:[#allocation7 + $0xa0] sm:$0xff]
        %v588 = vld [vmem:[#allocation7 + $0xa8] sm:$0xff]
        %v589 = vld [vmem:[#allocation7 + $0xb0] sm:$0xff]
        %v590 = vld [vmem:[#allocation7 + $0xb8] sm:$0xff]
        %v591 = vld [vmem:[#allocation7 + $0xc0] sm:$0xff]
        %v592 = vld [vmem:[#allocation7 + $0xc8] sm:$0xff]
        %v593 = vld [vmem:[#allocation7 + $0xd0] sm:$0xff]
        %v594 = vld [vmem:[#allocation7 + $0xd8] sm:$0xff]
        %v595 = vld [vmem:[#allocation7 + $0xe0] sm:$0xff]
        %v596 = vld [vmem:[#allocation7 + $0xe8] sm:$0xff]
        %v597 = vld [vmem:[#allocation7 + $0xf0] sm:$0xff]
        %v598 = vld [vmem:[#allocation7 + $0xf8] sm:$0xff]
        %v599 = vld [vmem:[#allocation7 + $0x100] sm:$0xff]
        %v600 = vld [vmem:[#allocation7 + $0x108] sm:$0xff]
        %v601 = vld [vmem:[#allocation7 + $0x110] sm:$0xff]
        %v602 = vld [vmem:[#allocation7 + $0x118] sm:$0xff]
        %v603 = vld [vmem:[#allocation7 + $0x120] sm:$0xff]
        %v604 = vld [vmem:[#allocation7 + $0x128] sm:$0xff]
        %v605 = vld [vmem:[#allocation7 + $0x130] sm:$0xff]
        %v606 = vld [vmem:[#allocation7 + $0x138] sm:$0xff]
        %v607 = vld [vmem:[#allocation7 + $0x140] sm:$0xff]
        %v608 = vld [vmem:[#allocation7 + $0x148] sm:$0xff]
        %v609 = vld [vmem:[#allocation7 + $0x150] sm:$0xff]
        %v610 = vld [vmem:[#allocation7 + $0x158] sm:$0xff]
        %v611 = vld [vmem:[#allocation7 + $0x160] sm:$0xff]
        %v612 = vld [vmem:[#allocation7 + $0x168] sm:$0xff]
        %v613 = vld [vmem:[#allocation7 + $0x170] sm:$0xff]
        %v614 = vld [vmem:[#allocation7 + $0x178] sm:$0xff]
        %v615 = vld [vmem:[#allocation7 + $0x180] sm:$0xff]
        %v616 = vld [vmem:[#allocation7 + $0x188] sm:$0xff]
        %v617 = vld [vmem:[#allocation7 + $0x190] sm:$0xff]
        %v618 = vld [vmem:[#allocation7 + $0x198] sm:$0xff]
        %v619 = vld [vmem:[#allocation7 + $0x1a0] sm:$0xff]
        %v620 = vld [vmem:[#allocation7 + $0x1a8] sm:$0xff]
        %v621 = vld [vmem:[#allocation7 + $0x1b0] sm:$0xff]
        %v622 = vld [vmem:[#allocation7 + $0x1b8] sm:$0xff]
        %v623 = vld [vmem:[#allocation7 + $0x1c0] sm:$0xff]
        %v624 = vld [vmem:[#allocation7 + $0x1c8] sm:$0xff]
        %v625 = vld [vmem:[#allocation7 + $0x1d0] sm:$0xff]
        %v626 = vld [vmem:[#allocation7 + $0x1d8] sm:$0xff]
        %v627 = vld [vmem:[#allocation7 + $0x1e0] sm:$0xff]
        %v628 = vld [vmem:[#allocation7 + $0x1e8] sm:$0xff]
        %v629 = vld [vmem:[#allocation7 + $0x1f0] sm:$0xff]
        %v630 = vld [vmem:[#allocation7 + $0x1f8] sm:$0xff]
        %631 = vmatprep.subr.mxu0 0.0
        %632 = vmatpush1.msra.mxu0 %v567
        %633 = vmatprep.subr.mxu0 0.0
        %634 = vmatpush1.msra.mxu0 %v568
        %635 = vmatprep.subr.mxu0 0.0
        %636 = vmatpush1.msra.mxu0 %v569
        %637 = vmatprep.subr.mxu0 0.0
        %638 = vmatpush1.msra.mxu0 %v570
        %639 = vmatprep.subr.mxu0 0.0
        %640 = vmatpush1.msra.mxu0 %v571
        %641 = vmatprep.subr.mxu0 0.0
        %642 = vmatpush1.msra.mxu0 %v572
        %643 = vmatprep.subr.mxu0 0.0
        %644 = vmatpush1.msra.mxu0 %v573
        %645 = vmatprep.subr.mxu0 0.0
        %646 = vmatpush1.msra.mxu0 %v574
        %647 = vmatprep.subr.mxu0 0.0
        %648 = vmatpush1.msra.mxu0 %v575
        %649 = vmatprep.subr.mxu0 0.0
        %650 = vmatpush1.msra.mxu0 %v576
        %651 = vmatprep.subr.mxu0 0.0
        %652 = vmatpush1.msra.mxu0 %v577
        %653 = vmatprep.subr.mxu0 0.0
        %654 = vmatpush1.msra.mxu0 %v578
        %655 = vmatprep.subr.mxu0 0.0
        %656 = vmatpush1.msra.mxu0 %v579
        %657 = vmatprep.subr.mxu0 0.0
        %658 = vmatpush1.msra.mxu0 %v580
        %659 = vmatprep.subr.mxu0 0.0
        %660 = vmatpush1.msra.mxu0 %v581
        %661 = vmatprep.subr.mxu0 0.0
        %662 = vmatpush1.msra.mxu0 %v582
        %663 = vmatprep.subr.mxu0 0.0
        %664 = vmatpush1.msra.mxu0 %v583
        %665 = vmatprep.subr.mxu0 0.0
        %666 = vmatpush1.msra.mxu0 %v584
        %667 = vmatprep.subr.mxu0 0.0
        %668 = vmatpush1.msra.mxu0 %v585
        %669 = vmatprep.subr.mxu0 0.0
        %670 = vmatpush1.msra.mxu0 %v586
        %671 = vmatprep.subr.mxu0 0.0
        %672 = vmatpush1.msra.mxu0 %v587
        %673 = vmatprep.subr.mxu0 0.0
        %674 = vmatpush1.msra.mxu0 %v588
        %675 = vmatprep.subr.mxu0 0.0
        %676 = vmatpush1.msra.mxu0 %v589
        %677 = vmatprep.subr.mxu0 0.0
        %678 = vmatpush1.msra.mxu0 %v590
        %679 = vmatprep.subr.mxu0 0.0
        %680 = vmatpush1.msra.mxu0 %v591
        %681 = vmatprep.subr.mxu0 0.0
        %682 = vmatpush1.msra.mxu0 %v592
        %683 = vmatprep.subr.mxu0 0.0
        %684 = vmatpush1.msra.mxu0 %v593
        %685 = vmatprep.subr.mxu0 0.0
        %686 = vmatpush1.msra.mxu0 %v594
        %687 = vmatprep.subr.mxu0 0.0
        %688 = vmatpush1.msra.mxu0 %v595
        %689 = vmatprep.subr.mxu0 0.0
        %690 = vmatpush1.msra.mxu0 %v596
        %691 = vmatprep.subr.mxu0 0.0
        %692 = vmatpush1.msra.mxu0 %v597
        %693 = vmatprep.subr.mxu0 0.0
        %694 = vmatpush1.msra.mxu0 %v598
        %695 = vmatprep.mubr.f32.mxu0 %v558
        %696 = vmatmul.mubr.f32.gmra.mrb[0].mxu0 %v557
        %v697 = vpop.f32.mrb[0].mxu0
        %v698 = vadd.f32 0.0, %v697
        %v699 = vpop.f32.mrb[0].mxu0
        %700 = vmatprep.mubr.f32.mxu0 %v562
        %701 = vmatmul.mubr.f32.gmra.mrb[0].mxu0 %v561
        %v702 = vpop.f32.mrb[0].mxu0
        %v703 = vadd.f32 0.0, %v702
        %v704 = vpop.f32.mrb[0].mxu0
        %705 = vdwg.mxu0
        %706 = vmatprep.subr.mxu0 0.0
        %707 = vmatpush1.msra.mxu0 %v599
        %708 = vmatprep.subr.mxu0 0.0
        %709 = vmatpush1.msra.mxu0 %v600
        %710 = vmatprep.subr.mxu0 0.0
        %711 = vmatpush1.msra.mxu0 %v601
        %712 = vmatprep.subr.mxu0 0.0
        %713 = vmatpush1.msra.mxu0 %v602
        %714 = vmatprep.subr.mxu0 0.0
        %715 = vmatpush1.msra.mxu0 %v603
        %716 = vmatprep.subr.mxu0 0.0
        %717 = vmatpush1.msra.mxu0 %v604
        %718 = vmatprep.subr.mxu0 0.0
        %719 = vmatpush1.msra.mxu0 %v605
        %720 = vmatprep.subr.mxu0 0.0
        %721 = vmatpush1.msra.mxu0 %v606
        %722 = vmatprep.subr.mxu0 0.0
        %723 = vmatpush1.msra.mxu0 %v607
        %724 = vmatprep.subr.mxu0 0.0
        %725 = vmatpush1.msra.mxu0 %v608
        %726 = vmatprep.subr.mxu0 0.0
        %727 = vmatpush1.msra.mxu0 %v609
        %728 = vmatprep.subr.mxu0 0.0
        %729 = vmatpush1.msra.mxu0 %v610
        %730 = vmatprep.subr.mxu0 0.0
        %731 = vmatpush1.msra.mxu0 %v611
        %732 = vmatprep.subr.mxu0 0.0
        %733 = vmatpush1.msra.mxu0 %v612
        %734 = vmatprep.subr.mxu0 0.0
        %735 = vmatpush1.msra.mxu0 %v613
        %736 = vmatprep.subr.mxu0 0.0
        %737 = vmatpush1.msra.mxu0 %v614
        %738 = vmatprep.subr.mxu0 0.0
        %739 = vmatpush1.msra.mxu0 %v615
        %740 = vmatprep.subr.mxu0 0.0
        %741 = vmatpush1.msra.mxu0 %v616
        %742 = vmatprep.subr.mxu0 0.0
        %743 = vmatpush1.msra.mxu0 %v617
        %744 = vmatprep.subr.mxu0 0.0
        %745 = vmatpush1.msra.mxu0 %v618
        %746 = vmatprep.subr.mxu0 0.0
        %747 = vmatpush1.msra.mxu0 %v619
        %748 = vmatprep.subr.mxu0 0.0
        %749 = vmatpush1.msra.mxu0 %v620
        %750 = vmatprep.subr.mxu0 0.0
        %751 = vmatpush1.msra.mxu0 %v621
        %752 = vmatprep.subr.mxu0 0.0
        %753 = vmatpush1.msra.mxu0 %v622
        %754 = vmatprep.subr.mxu0 0.0
        %755 = vmatpush1.msra.mxu0 %v623
        %756 = vmatprep.subr.mxu0 0.0
        %757 = vmatpush1.msra.mxu0 %v624
        %758 = vmatprep.subr.mxu0 0.0
        %759 = vmatpush1.msra.mxu0 %v625
        %760 = vmatprep.subr.mxu0 0.0
        %761 = vmatpush1.msra.mxu0 %v626
        %762 = vmatprep.subr.mxu0 0.0
        %763 = vmatpush1.msra.mxu0 %v627
        %764 = vmatprep.subr.mxu0 0.0
        %765 = vmatpush1.msra.mxu0 %v628
        %766 = vmatprep.subr.mxu0 0.0
        %767 = vmatpush1.msra.mxu0 %v629
        %768 = vmatprep.subr.mxu0 0.0
        %769 = vmatpush1.msra.mxu0 %v630
        %770 = vmatprep.mubr.f32.mxu0 %v560
        %771 = vmatmul.mubr.f32.gmra.mrb[0].mxu0 %v559
        %v772 = vpop.f32.mrb[0].mxu0
        %v773 = vadd.f32 %v698, %v772
        %v774 = vpop.f32.mrb[0].mxu0
        %775 = vmatprep.mubr.f32.mxu0 %v564
        %776 = vmatmul.mubr.f32.gmra.mrb[0].mxu0 %v563
        %v777 = vpop.f32.mrb[0].mxu0
        %v778 = vadd.f32 %v703, %v777
        %v779 = vpop.f32.mrb[0].mxu0
        %780 = vdwg.mxu0
        %v781 = vadd.f32 %v565, %v773
        %v782 = vadd.f32 %v566, %v778
        %783 = vst [vmem:[%s271] sm:$0xff] %v781
        %784 = vst [vmem:[%s271 + $0x8] sm:$0xff] %v782
        %s785 = sand.u32 %s141, 1
        %s786 = scalar_lea.sflag [#allocation4], %s785
        %s787 = sand.u32 %s141, 1
        %s788 = smul.addr %s787, 16
        %s789 = scalar_lea.vmem [#allocation8], %s788
        // Predicated region
        $region53: #{tpu_custom_call.1} parent=39 // pred_check
          %p790 = pneg %p151
        $region54: #{tpu_custom_call.1} parent=39 // pred_check_branch
          %792 = sbr.rel (%p790) target = $region56
        $region55: #{tpu_custom_call.1} parent=39 // pred_region
          %s793 = smul.u32 2, %s23
          %s795 = ssub.s32 256, 256
          %796 = vsyncadd %s786, %s795
          %s797 = smul.addr %s793, 128
          %s798 = scalar_lea.hbm %s5, %s797
          %s799 = sshll.u32 %s789, 4
          %s800 = int_to_ptr.vmem [resolvable:$true] %s799
          %805 = dma.vmem_to_hbm [thread:$0]  %s800, 256, %s798, %s786, 128, 128, 8
        $region56: #{tpu_custom_call.1} parent=39 // pred_fallthru
          _
      $region40: #{tpu_custom_call.1} parent=5 // pred_fallthru
        _
      %p806 = scmp.le.s32.totalorder 2, %s18
      // Predicated region
      $region57: #{tpu_custom_call.1} parent=5 // pred_check
        %p807 = pneg %p806
      $region58: #{tpu_custom_call.1} parent=5 // pred_check_branch
        %809 = sbr.rel (%p807) target = $region60
      $region59: #{tpu_custom_call.1} parent=5 // pred_region
        %s810 = ssub.s32 %s18, 2
        // Predicated region
        $region61: #{tpu_custom_call.1} parent=59 // pred_check
          %p811 = pneg %p157
        $region62: #{tpu_custom_call.1} parent=59 // pred_check_branch
          %813 = sbr.rel (%p811) target = $region64
        $region63: #{tpu_custom_call.1} parent=59 // pred_region
          %s814 = sand.u32 %s142, 1
          %s815 = scalar_lea.sflag [#allocation4], %s814
          %s816 = sand.u32 %s142, 1
          %s817 = smul.addr %s816, 16
          %s818 = scalar_lea.vmem [#allocation8], %s817
          %819 = dma.done %s815, 256
        $region64: #{tpu_custom_call.1} parent=59 // pred_fallthru
          _
      $region60: #{tpu_custom_call.1} parent=5 // pred_fallthru
        _
    $region6: #{tpu_custom_call.1} parent=1 // loop_footer
      %s22 = sadd.s32 1, %s18
    $region7: #{tpu_custom_call.1} parent=1 // loop_footer_branch
      %17 = sbr.rel target = $region3
    $region8: #{tpu_custom_call.1} parent=1 // loop_exit
      _
    %820 = vsyncpa [#allocation3], 1
    %s821 = scalar_lea.sflag [#allocation3], 1
    %822 = vsyncpa %s821, 1
    %823 = vsyncpa [#allocation6], 1
    %824 = vsyncpa [#allocation4], 1
    %s825 = scalar_lea.sflag [#allocation4], 1
    %826 = vsyncpa %s825, 1

</llo_original>
